<compile_context>
chip_gen: v7x
topology: tpu7x:2x2x1
jax: 0.10.0
libtpu: 0.0.40
codegen_flags: <defaults>
</compile_context>

<pallas_src>
import functools
import math

import jax
import jax.numpy as jnp
from jax.experimental import pallas as pl
from jax.experimental.pallas import tpu as pltpu


_VMEM_LIMIT_BYTES = 48 * 1024 * 1024          # headroom below v7x's 64 MiB VMEM
_GELU_C = math.sqrt(2.0 / math.pi)


# ----------------------------- tiling helpers -------------------------------

def _pick_tile(dim, target, align):
    """Largest divisor of `dim` that is <= target and a multiple of `align`
    (falls back to the full dim, which is always a legal block size)."""
    if dim <= target:
        return dim
    for cand in range(min(target, dim), 0, -1):
        if dim % cand == 0 and cand % align == 0:
            return cand
    # TODO(synk): ragged dims (e.g. vocab=50257) fall back to a full-dim block;
    # a masked edge-tile path would be needed for non-divisible real sizes.
    return dim


def _pick_group(n, target):
    for cand in range(min(target, n), 0, -1):
        if n % cand == 0:
            return cand
    return 1


# ----------------------------- Pallas kernels ------------------------------

def _gelu_f32(x):
    return 0.5 * x * (1.0 + jnp.tanh(_GELU_C * (x + 0.044715 * x * x * x)))


def _matmul_kernel(*refs, activation, transpose_rhs, has_bias, fuse_residual):
    # refs = (x, w, [bias], [residual], out, acc)
    x_ref, w_ref = refs[0], refs[1]
    i = 2
    b_ref = None
    if has_bias:
        b_ref = refs[i]
        i += 1
    r_ref = None
    if fuse_residual:
        r_ref = refs[i]
        i += 1
    o_ref = refs[i]
    acc_ref = refs[i + 1]

    @pl.when(pl.program_id(2) == 0)
    def _():
        acc_ref[...] = jnp.zeros_like(acc_ref)

    x = x_ref[...]                                   # (tm, tk) bf16
    w = w_ref[...]                                   # (tk, tn) or (tn, tk) bf16
    if transpose_rhs:
        acc_ref[...] += jax.lax.dot_general(
            x, w, (((1,), (1,)), ((), ())), preferred_element_type=jnp.float32)
    else:
        acc_ref[...] += jnp.dot(x, w, preferred_element_type=jnp.float32)

    @pl.when(pl.program_id(2) == pl.num_programs(2) - 1)
    def _():
        out = acc_ref[...]
        if has_bias:
            out = out + b_ref[...].astype(jnp.float32)
        if activation == "gelu":
            out = _gelu_f32(out)
        if fuse_residual:
            out = out + r_ref[...].astype(jnp.float32)
        o_ref[...] = out.astype(o_ref.dtype)


def _layernorm_kernel(x_ref, g_ref, b_ref, o_ref, *, eps):
    x = x_ref[...].astype(jnp.float32)               # (tm, D)
    u = jnp.mean(x, axis=-1, keepdims=True)
    s = jnp.mean(jnp.square(x - u), axis=-1, keepdims=True)
    xn = (x - u) / jnp.sqrt(s + eps)
    o_ref[...] = (g_ref[...].astype(jnp.float32) * xn
                  + b_ref[...].astype(jnp.float32)).astype(o_ref.dtype)


def _flash_attention_kernel(q_ref, k_ref, v_ref, o_ref, m_sc, l_sc, acc_sc, *,
                            scale):
    # blocks: q (G, tq, Dh), k/v (G, tkv, Dh); grid (BH/G, T//tq, T//tkv)
    qi = pl.program_id(1)
    ki = pl.program_id(2)
    tq = q_ref.shape[1]
    tkv = k_ref.shape[1]

    @pl.when(ki == 0)
    def _():
        m_sc[...] = jnp.full(m_sc.shape, -jnp.inf, dtype=m_sc.dtype)
        l_sc[...] = jnp.zeros_like(l_sc)
        acc_sc[...] = jnp.zeros_like(acc_sc)

    # causal skip: kv block entirely above the diagonal contributes nothing
    @pl.when(ki * tkv <= qi * tq + (tq - 1))
    def _():
        q = (q_ref[...].astype(jnp.float32) * scale).astype(jnp.bfloat16)
        k = k_ref[...].astype(jnp.bfloat16)
        v = v_ref[...].astype(jnp.bfloat16)
        s = jnp.einsum("gqd,gkd->gqk", q, k,
                       preferred_element_type=jnp.float32)     # (G, tq, tkv) f32
        row = qi * tq + jax.lax.broadcasted_iota(jnp.int32, s.shape, 1)
        col = ki * tkv + jax.lax.broadcasted_iota(jnp.int32, s.shape, 2)
        s = jnp.where(col <= row, s, -1e10)                    # torch's -1e10 mask

        m_prev = m_sc[...]
        m_new = jnp.maximum(m_prev, jnp.max(s, axis=-1, keepdims=True))
        alpha = jnp.exp(m_prev - m_new)
        p = jnp.exp(s - m_new)
        l_sc[...] = alpha * l_sc[...] + jnp.sum(p, axis=-1, keepdims=True)
        acc_sc[...] = alpha * acc_sc[...] + jnp.einsum(
            "gqk,gkd->gqd", p.astype(jnp.bfloat16), v,
            preferred_element_type=jnp.float32)
        m_sc[...] = m_new

    @pl.when(ki == pl.num_programs(2) - 1)
    def _():
        o_ref[...] = (acc_sc[...] / l_sc[...]).astype(o_ref.dtype)


# ----------------------------- Pallas wrappers ------------------------------

def linear(x, w, b=None, *, activation=None, residual=None,
           transpose_rhs=False, out_dtype=jnp.float32,
           tm_target=256, tn_target=512, tk_target=512):
    """Tiled o = x @ w (+ b) (+ gelu) (+ residual).

    x: (M, K) any float dtype (cast to bf16), w: (K, N) bf16 or (N, K) bf16 if
    transpose_rhs.  Bias/residual are added in f32 in the last-K epilogue.
    """
    m, kdim = x.shape
    n = w.shape[0] if transpose_rhs else w.shape[1]

    x = x.astype(jnp.bfloat16)
    w = w.astype(jnp.bfloat16)

    tm = _pick_tile(m, tm_target, 8)
    tn = _pick_tile(n, tn_target, 128)
    tk = _pick_tile(kdim, tk_target, 128)
    grid = (m // tm, n // tn, kdim // tk)

    in_specs = [pl.BlockSpec((tm, tk), lambda i, j, k: (i, k))]
    if transpose_rhs:
        in_specs.append(pl.BlockSpec((tn, tk), lambda i, j, k: (j, k)))
    else:
        in_specs.append(pl.BlockSpec((tk, tn), lambda i, j, k: (k, j)))
    inputs = [x, w]

    has_bias = b is not None
    if has_bias:
        in_specs.append(pl.BlockSpec((1, tn), lambda i, j, k: (0, j)))
        inputs.append(b.reshape(1, n).astype(jnp.float32))

    fuse_residual = residual is not None
    if fuse_residual:
        in_specs.append(pl.BlockSpec((tm, tn), lambda i, j, k: (i, j)))
        inputs.append(residual)

    kern = functools.partial(
        _matmul_kernel, activation=activation, transpose_rhs=transpose_rhs,
        has_bias=has_bias, fuse_residual=fuse_residual)

    return pl.pallas_call(
        kern,
        out_shape=jax.ShapeDtypeStruct((m, n), out_dtype),
        grid=grid,
        in_specs=in_specs,
        out_specs=pl.BlockSpec((tm, tn), lambda i, j, k: (i, j)),
        scratch_shapes=[pltpu.VMEM((tm, tn), jnp.float32)],
        compiler_params=pltpu.CompilerParams(
            dimension_semantics=("parallel", "parallel", "arbitrary"),
            vmem_limit_bytes=_VMEM_LIMIT_BYTES),
    )(*inputs)


def layernorm(x, g, b, eps, out_dtype=jnp.float32):
    m, d = x.shape
    tm = _pick_tile(m, 512, 8)
    return pl.pallas_call(
        functools.partial(_layernorm_kernel, eps=eps),
        out_shape=jax.ShapeDtypeStruct((m, d), out_dtype),
        grid=(m // tm,),
        in_specs=[pl.BlockSpec((tm, d), lambda i: (i, 0)),
                  pl.BlockSpec((1, d), lambda i: (0, 0)),
                  pl.BlockSpec((1, d), lambda i: (0, 0))],
        out_specs=pl.BlockSpec((tm, d), lambda i: (i, 0)),
        compiler_params=pltpu.CompilerParams(
            dimension_semantics=("parallel",),
            vmem_limit_bytes=_VMEM_LIMIT_BYTES),
    )(x, g.reshape(1, d), b.reshape(1, d))


def attention_core(q, k, v, scale):
    """Flash-style causal attention.  q, k, v: (B*H, T, Dh) -> (B*H, T, Dh) bf16."""
    bh, t, dh = q.shape
    g = _pick_group(bh, 8)            # heads per grid step (amortize step cost)
    tq = _pick_tile(t, 256, 8)
    tkv = _pick_tile(t, 256, 8)
    grid = (bh // g, t // tq, t // tkv)

    q_spec = pl.BlockSpec((g, tq, dh), lambda i, qi, ki: (i, qi, 0))
    kv_spec = pl.BlockSpec((g, tkv, dh), lambda i, qi, ki: (i, ki, 0))
    o_spec = pl.BlockSpec((g, tq, dh), lambda i, qi, ki: (i, qi, 0))

    return pl.pallas_call(
        functools.partial(_flash_attention_kernel, scale=scale),
        out_shape=jax.ShapeDtypeStruct((bh, t, dh), jnp.bfloat16),
        grid=grid,
        in_specs=[q_spec, kv_spec, kv_spec],
        out_specs=o_spec,
        scratch_shapes=[pltpu.VMEM((g, tq, 1), jnp.float32),   # m
                        pltpu.VMEM((g, tq, 1), jnp.float32),   # l
                        pltpu.VMEM((g, tq, dh), jnp.float32)], # acc
        compiler_params=pltpu.CompilerParams(
            dimension_semantics=("parallel", "parallel", "arbitrary"),
            vmem_limit_bytes=_VMEM_LIMIT_BYTES),
    )(q.astype(jnp.bfloat16), k.astype(jnp.bfloat16), v.astype(jnp.bfloat16))


# ----------------------------- Model (glue) ---------------------------------

def init_params(key, cfg):
    d = cfg["n_embd"]
    n_layer = cfg["n_layer"]
    keys = jax.random.split(key, 2 + 4 * n_layer)

    def normal_bf16(k, shape, std):
        return (std * jax.random.normal(k, shape, dtype=jnp.float32)).astype(
            jnp.bfloat16)

    params = {
        "wte": normal_bf16(keys[0], (cfg["vocab_size"], d), 1.0),
        "wpe": normal_bf16(keys[1], (cfg["n_positions"], d), 1.0),
        "lnf_g": jnp.ones((d,), jnp.float32),
        "lnf_b": jnp.zeros((d,), jnp.float32),
        "blocks": [],
    }
    kidx = 2
    for _ in range(n_layer):
        blk = {
            "ln1_g": jnp.ones((d,), jnp.float32),
            "ln1_b": jnp.zeros((d,), jnp.float32),
            "attn_w": normal_bf16(keys[kidx + 0], (d, 3 * d), 0.02),
            "attn_b": jnp.zeros((3 * d,), jnp.float32),
            "proj_w": normal_bf16(keys[kidx + 1], (d, d), 0.02),
            "proj_b": jnp.zeros((d,), jnp.float32),
            "ln2_g": jnp.ones((d,), jnp.float32),
            "ln2_b": jnp.zeros((d,), jnp.float32),
            "fc_w": normal_bf16(keys[kidx + 2], (d, 4 * d), 0.02),
            "fc_b": jnp.zeros((4 * d,), jnp.float32),
            "mproj_w": normal_bf16(keys[kidx + 3], (4 * d, d), 0.02),
            "mproj_b": jnp.zeros((d,), jnp.float32),
        }
        kidx += 4
        params["blocks"].append(blk)
    return params


def gpt2_lm_forward(params, input_ids, cfg):
    # Matches GPT2LMModel.forward(input_ids) with past=None, len_past=None,
    # lm_labels=None -> returns (lm_logits, presents).
    b, t = input_ids.shape
    d, h = cfg["n_embd"], cfg["n_head"]
    dh = d // h
    eps = cfg["layer_norm_epsilon"]

    pos = jnp.arange(t, dtype=jnp.int32)
    hidden = (jnp.take(params["wte"], input_ids, axis=0).astype(jnp.float32)
              + jnp.take(params["wpe"], pos, axis=0).astype(jnp.float32)[None])
    hidden = hidden.reshape(b * t, d)                              # (B*T, D) f32

    def split_heads(x):   # (B*T, D) -> (B*H, T, Dh)
        return x.reshape(b, t, h, dh).transpose(0, 2, 1, 3).reshape(b * h, t, dh)

    # TODO(synk): head split/merge transposes could be folded into the QKV /
    # proj BlockSpec index_maps to save hidden-sized HBM round trips.
    presents = []
    for blk in params["blocks"]:
        # ---- attention sub-block ----
        x_ln = layernorm(hidden, blk["ln1_g"], blk["ln1_b"], eps,
                         out_dtype=jnp.bfloat16)
        qkv = linear(x_ln, blk["attn_w"], blk["attn_b"],
                     out_dtype=jnp.bfloat16)                       # (B*T, 3D)
        q, k, v = jnp.split(qkv, 3, axis=-1)
        qh, kh, vh = split_heads(q), split_heads(k), split_heads(v)

        a = attention_core(qh, kh, vh, 1.0 / math.sqrt(dh))        # (B*H, T, Dh)
        a = a.reshape(b, h, t, dh).transpose(0, 2, 1, 3).reshape(b * t, d)
        # c_proj with fused residual add (hidden = hidden + a)
        hidden = linear(a, blk["proj_w"], blk["proj_b"], residual=hidden)

        # present = stack((key.transpose(-2,-1), value)) -> (2, B, H, T, Dh)
        presents.append(
            jnp.stack([kh.reshape(b, h, t, dh), vh.reshape(b, h, t, dh)]))

        # ---- MLP sub-block ----
        x_ln2 = layernorm(hidden, blk["ln2_g"], blk["ln2_b"], eps,
                          out_dtype=jnp.bfloat16)
        m = linear(x_ln2, blk["fc_w"], blk["fc_b"], activation="gelu",
                   out_dtype=jnp.bfloat16)
        # c_proj with fused residual add (hidden = hidden + m)
        hidden = linear(m, blk["mproj_w"], blk["mproj_b"], residual=hidden)

    h_final = layernorm(hidden, params["lnf_g"], params["lnf_b"], eps,
                        out_dtype=jnp.bfloat16)

    # LM head: weights tied to wte, no bias; contract wte's last dim directly
    # (no materialized wte.T, no zero-bias add).
    logits = linear(h_final, params["wte"], transpose_rhs=True,
                    out_dtype=jnp.float32)                         # (B*T, V)
    logits = logits.reshape(b, t, cfg["vocab_size"])
    return logits, presents

# TODO(synk): lm_labels / cross-entropy loss path and the KV-cache
# (past / len_past) branch are not exercised in this forward
# (lm_labels=None, past=None), matching the reference default path.


# ----------------------------- main -----------------------------------------

if __name__ == "__main__":
    cfg = {
        "vocab_size": 128,
        "n_positions": 16,
        "n_ctx": 16,
        "n_embd": 32,
        "n_head": 4,
        "n_layer": 2,
        "layer_norm_epsilon": 1e-5,
    }
    key = jax.random.PRNGKey(0)
    k_params, k_ids = jax.random.split(key)
    params = init_params(k_params, cfg)

    batch, seq = 2, 8
    input_ids = jax.random.randint(
        k_ids, (batch, seq), 0, cfg["vocab_size"], dtype=jnp.int32)

    logits, presents = gpt2_lm_forward(params, input_ids, cfg)
    jax.block_until_ready(logits)
    jax.block_until_ready(presents)

    assert logits.shape == (batch, seq, cfg["vocab_size"])
    assert len(presents) == cfg["n_layer"]
    assert presents[0].shape == (
        2, batch, cfg["n_head"], seq, cfg["n_embd"] // cfg["n_head"])
    assert bool(jnp.all(jnp.isfinite(logits)))
    print("KERNEL_OK")
</pallas_src>

<mosaic_0001>
module attributes {stable_mosaic.version = 11 : i64} {
  func.func @_layernorm_kernel(%arg0: i32, %arg1: memref<16x32xf32, #tpu.memory_space<vmem>>, %arg2: memref<1x32xf32, #tpu.memory_space<vmem>>, %arg3: memref<1x32xf32, #tpu.memory_space<vmem>>, %arg4: memref<16x32xbf16, #tpu.memory_space<vmem>>) attributes {dimension_semantics = [#tpu.dimension_semantics<parallel>], iteration_bounds = array<i64: 1>, scalar_prefetch = 0 : i64, scratch_operands = 0 : i64, tpu.core_type = #tpu.core_type<tc>, window_params = [{transform_indices = @transform_0, window_bounds = array<i64: 16, 32>}, {pipeline_mode = #tpu.pipeline_mode<synchronous>, transform_indices = @transform_1, window_bounds = array<i64: 1, 32>}, {pipeline_mode = #tpu.pipeline_mode<synchronous>, transform_indices = @transform_2, window_bounds = array<i64: 1, 32>}, {transform_indices = @transform_3, window_bounds = array<i64: 16, 32>}]} {
    %c0 = arith.constant 0 : index
    %c0_0 = arith.constant 0 : index
    %0 = vector.load %arg1[%c0, %c0_0] : memref<16x32xf32, #tpu.memory_space<vmem>>, vector<16x32xf32>
    %cst = arith.constant dense<0.000000e+00> : vector<16xf32>
    %1 = vector.multi_reduction <add>, %0, %cst [1] : vector<16x32xf32> to vector<16xf32>
    %2 = vector.shape_cast %1 : vector<16xf32> to vector<16x1xf32>
    %cst_1 = arith.constant 3.200000e+01 : f32
    %3 = vector.broadcast %cst_1 : f32 to vector<16x1xf32>
    %4 = arith.divf %2, %3 : vector<16x1xf32>
    %5 = vector.broadcast %4 : vector<16x1xf32> to vector<16x32xf32>
    %6 = arith.subf %0, %5 : vector<16x32xf32>
    %7 = arith.mulf %6, %6 : vector<16x32xf32>
    %cst_2 = arith.constant dense<0.000000e+00> : vector<16xf32>
    %8 = vector.multi_reduction <add>, %7, %cst_2 [1] : vector<16x32xf32> to vector<16xf32>
    %9 = vector.shape_cast %8 : vector<16xf32> to vector<16x1xf32>
    %cst_3 = arith.constant 3.200000e+01 : f32
    %10 = vector.broadcast %cst_3 : f32 to vector<16x1xf32>
    %11 = arith.divf %9, %10 : vector<16x1xf32>
    %12 = vector.broadcast %4 : vector<16x1xf32> to vector<16x32xf32>
    %13 = arith.subf %0, %12 : vector<16x32xf32>
    %cst_4 = arith.constant 9.99999974E-6 : f32
    %14 = vector.broadcast %cst_4 : f32 to vector<16x1xf32>
    %15 = arith.addf %11, %14 : vector<16x1xf32>
    %16 = math.sqrt %15 : vector<16x1xf32>
    %17 = vector.broadcast %16 : vector<16x1xf32> to vector<16x32xf32>
    %18 = arith.divf %13, %17 : vector<16x32xf32>
    %c0_5 = arith.constant 0 : index
    %c0_6 = arith.constant 0 : index
    %19 = vector.load %arg2[%c0_5, %c0_6] : memref<1x32xf32, #tpu.memory_space<vmem>>, vector<1x32xf32>
    %20 = vector.broadcast %19 : vector<1x32xf32> to vector<16x32xf32>
    %21 = arith.mulf %20, %18 : vector<16x32xf32>
    %c0_7 = arith.constant 0 : index
    %c0_8 = arith.constant 0 : index
    %22 = vector.load %arg3[%c0_7, %c0_8] : memref<1x32xf32, #tpu.memory_space<vmem>>, vector<1x32xf32>
    %23 = vector.broadcast %22 : vector<1x32xf32> to vector<16x32xf32>
    %24 = arith.addf %21, %23 : vector<16x32xf32>
    %25 = arith.truncf %24 : vector<16x32xf32> to vector<16x32xbf16>
    %c0_9 = arith.constant 0 : index
    %c0_10 = arith.constant 0 : index
    %26 = vector.load %arg4[%c0_9, %c0_10] : memref<16x32xbf16, #tpu.memory_space<vmem>>, vector<16x32xbf16>
    tpu.vector_store %arg4[%c0_9, %c0_10], %25 {strides = array<i32>} : memref<16x32xbf16, #tpu.memory_space<vmem>>, vector<16x32xbf16>,
    return
  }
  func.func @transform_0(%arg0: i32) -> (i32, i32) {
    %c0_i32 = arith.constant 0 : i32
    %c0_i32_0 = arith.constant 0 : i32
    return %arg0, %c0_i32 : i32, i32
  }
  func.func @transform_1(%arg0: i32) -> (i32, i32) {
    %c0_i32 = arith.constant 0 : i32
    %c0_i32_0 = arith.constant 0 : i32
    %c0_i32_1 = arith.constant 0 : i32
    return %c0_i32, %c0_i32_0 : i32, i32
  }
  func.func @transform_2(%arg0: i32) -> (i32, i32) {
    %c0_i32 = arith.constant 0 : i32
    %c0_i32_0 = arith.constant 0 : i32
    %c0_i32_1 = arith.constant 0 : i32
    return %c0_i32, %c0_i32_0 : i32, i32
  }
  func.func @transform_3(%arg0: i32) -> (i32, i32) {
    %c0_i32 = arith.constant 0 : i32
    %c0_i32_0 = arith.constant 0 : i32
    return %arg0, %c0_i32 : i32, i32
  }
}

</mosaic_0001>

<llo_original>
// kernel: tpu_custom_call.1
$region0: #{tpu_custom_call.1}
  #allocation0 [shape = 'u32[]', space=smem, size = 0x4, offset = 0x4, fixed_abs, tag = 'smem constant byte address 0x4 - core index']
  #allocation1 [shape = 'u32[144,128]{1,0:T(1,128)}', space=vmem, size = 0x12000, scoped, tag = 'internal scratch']
  %s0 = inlined_call_operand.hbm [shape: f32[16,32], index: 0, kind: input, shape index: {}]
  %s1 = inlined_call_operand.vmem [shape: f32[1,32], index: 1, kind: input, shape index: {}]
  %s2 = inlined_call_operand.vmem [shape: f32[1,32], index: 2, kind: input, shape index: {}]
  %s3 = inlined_call_operand.hbm [shape: bf16[16,32], index: 3, kind: output, shape index: {}]
  %s4 = sld [smem:[#allocation0]]
  $region26: #{tpu_custom_call.1} parent=0
    _
  %s6 = ssub.s32 1, %s4
  %s7 = scalar_select 0, %s6, %s4
  $region1: #{tpu_custom_call.1} parent=0
    #allocation2 [shape = 'u8[8192]{0}', space=vmem, size = 0x2000, scoped, tag = 'input window, operand 0, single buffered']
    #allocation3 [shape = 's32[1]{0}', space=sflag, size = 0x4, scoped, tag = 'scoped memory for tpu_custom_call.1']
    #allocation4 [shape = 's32[1]{0}', space=sflag, size = 0x4, scoped, tag = 'scoped memory for tpu_custom_call.1']
    #allocation5 [shape = 'u8[4096]{0}', space=vmem, size = 0x1000, scoped, tag = 'output window, operand 0, single buffered']
    %8 = vsyncpa [#allocation3], 0
    %9 = vsyncpa [#allocation4], 0
    // Predicated region
    $region2: #{tpu_custom_call.1} parent=1 // pred_check
      _
    $region3: #{tpu_custom_call.1} parent=1 // pred_check_branch
      %11 = sbr.rel (0) target = $region5
    $region4: #{tpu_custom_call.1} parent=1 // pred_region
      %s13 = ssub.s32 256, 256
      %14 = vsyncadd [#allocation3], %s13
      %s15 = sshll.u32 [#allocation2], 4
      %s16 = int_to_ptr.vmem [resolvable:$true] %s15
      %21 = dma.hbm_to_vmem [thread:$0]  %s0, 256, %s16, [#allocation3], 128, 128, 8
    $region5: #{tpu_custom_call.1} parent=1 // pred_fallthru
      _
    // Predicated region
    $region6: #{tpu_custom_call.1} parent=1 // pred_check
      _
    $region7: #{tpu_custom_call.1} parent=1 // pred_check_branch
      %23 = sbr.rel (0) target = $region9
    $region8: #{tpu_custom_call.1} parent=1 // pred_region
      _
    $region9: #{tpu_custom_call.1} parent=1 // pred_fallthru
      _
    // Predicated region
    $region10: #{tpu_custom_call.1} parent=1 // pred_check
      _
    $region11: #{tpu_custom_call.1} parent=1 // pred_check_branch
      %25 = sbr.rel (0) target = $region13
    $region12: #{tpu_custom_call.1} parent=1 // pred_region
      _
    $region13: #{tpu_custom_call.1} parent=1 // pred_fallthru
      _
    // Predicated region
    $region14: #{tpu_custom_call.1} parent=1 // pred_check
      _
    $region15: #{tpu_custom_call.1} parent=1 // pred_check_branch
      %27 = sbr.rel (0) target = $region17
    $region16: #{tpu_custom_call.1} parent=1 // pred_region
      %28 = dma.done [#allocation3], 256
    $region17: #{tpu_custom_call.1} parent=1 // pred_fallthru
      _
    %v29 = vld [vmem:[#allocation2] sm:$0xff]
    %v30 = vld [vmem:[#allocation2 + $0x8] sm:$0xff]
    %vm31 = vcmask 261120
    %v32 = vsel %vm31, %v29, 0.0
    %33 = vadd.xlane.f32.xlu0 %v32
    %v34 = vpop.xlane.xlu0 %33
    %v35 = vsel %vm31, %v30, 0.0
    %36 = vadd.xlane.f32.xlu0 %v35
    %v37 = vpop.xlane.xlu0 %36
    %v38 = vrcp.pop 32.0
    %v39 = vmul.f32 %v34, %v38
    %v40 = vmul.f32 %v37, %v38
    %v41 = vsub.f32 %v29, %v39
    %v42 = vsub.f32 %v30, %v40
    %v43 = vmul.f32 %v41, %v41
    %v44 = vmul.f32 %v42, %v42
    %v45 = vsel %vm31, %v43, 0.0
    %46 = vadd.xlane.f32.xlu0 %v45
    %v47 = vpop.xlane.xlu0 %46
    %v48 = vsel %vm31, %v44, 0.0
    %49 = vadd.xlane.f32.xlu0 %v48
    %v50 = vpop.xlane.xlu0 %49
    %v51 = vmul.f32 %v47, %v38
    %v52 = vmul.f32 %v50, %v38
    %v53 = vadd.f32 %v51, 1e-05
    %v54 = vadd.f32 %v52, 1e-05
    %v55 = vrsqrt.pop %v53
    %v56 = vmul.f32 %v53, %v55
    %vm57 = vcmp.eq.f32.partialorder %v53, inf
    %v58 = vsel %vm57, %v53, %v56
    %vm59 = vcmp.eq.f32.partialorder %v53, 0.0
    %v60 = vand.u32 %v53, 2147483648
    %v61 = vsel %vm59, %v60, %v58
    %v62 = vrsqrt.pop %v54
    %v63 = vmul.f32 %v54, %v62
    %vm64 = vcmp.eq.f32.partialorder %v54, inf
    %v65 = vsel %vm64, %v54, %v63
    %vm66 = vcmp.eq.f32.partialorder %v54, 0.0
    %v67 = vand.u32 %v54, 2147483648
    %v68 = vsel %vm66, %v67, %v65
    %v69 = vrcp.pop %v61
    %v70 = vmul.f32 %v41, %v69
    %v71 = vrcp.pop %v68
    %v72 = vmul.f32 %v42, %v71
    %v73 = vld [vmem:[%s1] sm:$0x1]
    %v75 = vlaneseq
    %v76 = vshrl.u32 %v75, 7
    %v77 = vsub.s32 0, %v76
    %v78 = vrot.slane %v73, %v77
    %v80 = vmul.f32 %v78, %v70
    %v81 = vmul.f32 %v78, %v72
    %v82 = vld [vmem:[%s2] sm:$0x1]
    %v84 = vlaneseq
    %v85 = vshrl.u32 %v84, 7
    %v86 = vsub.s32 0, %v85
    %v87 = vrot.slane %v82, %v86
    %v89 = vadd.f32 %v80, %v87
    %v90 = vadd.f32 %v81, %v87
    %v91 = vpack.c.bf16 %v90, %v89
    %v93 = vunpack.c.l.b16 %v91
    %v94 = vunpack.c.h.b16 %v91
    %v95 = vpack.c.b16 %v93, %v93
    %v96 = vpack.c.b16 %v94, %v94
    %vm99 = vcmask 257024
    %100 = vst.msk [vmem:[#allocation5] sm:$0xf] %vm99, %v95
    %101 = vst.msk [vmem:[#allocation5 + $0x4] sm:$0xf] %vm99, %v96
    // Predicated region
    $region18: #{tpu_custom_call.1} parent=1 // pred_check
      _
    $region19: #{tpu_custom_call.1} parent=1 // pred_check_branch
      %103 = sbr.rel (0) target = $region21
    $region20: #{tpu_custom_call.1} parent=1 // pred_region
      %s105 = ssub.s32 128, 128
      %106 = vsyncadd [#allocation4], %s105
      %s107 = sshll.u32 [#allocation5], 4
      %s108 = int_to_ptr.vmem [resolvable:$true] %s107
      %113 = dma.vmem_to_hbm [thread:$0]  %s108, 128, %s3, [#allocation4], 64, 64, 4
    $region21: #{tpu_custom_call.1} parent=1 // pred_fallthru
      _
    // Predicated region
    $region22: #{tpu_custom_call.1} parent=1 // pred_check
      _
    $region23: #{tpu_custom_call.1} parent=1 // pred_check_branch
      %115 = sbr.rel (0) target = $region25
    $region24: #{tpu_custom_call.1} parent=1 // pred_region
      %116 = dma.done [#allocation4], 128
    $region25: #{tpu_custom_call.1} parent=1 // pred_fallthru
      _
    %117 = vsyncpa [#allocation3], 1
    %118 = vsyncpa [#allocation4], 1

</llo_original>
